<compile_context>
chip_gen: v7x
topology: tpu7x:2x2x1
jax: 0.10.0
libtpu: 0.0.40
codegen_flags: <defaults>
</compile_context>

<pallas_src>
import functools

import jax
import jax.numpy as jnp
from jax.experimental import pallas as pl
from jax.experimental.pallas import tpu as pltpu


def _conv3x3_elu_kernel(x_ref, w_ref, b_ref, o_ref, xs_ref, *, H, W):
    """Fused ReflectionPad2d(1) + Conv2d(k=3) + ELU for one batch element.

    x_ref : (1, C, H*W)     input image, rows flattened onto the lane axis
    w_ref : (3, 3, O, C)    conv weights, w_ref[ky, kx, o, c]
    b_ref : (O, 1)          bias
    o_ref : (1, O, H*W)     output (lane-dense)
    xs_ref: (C, H*W + 2*W)  scratch: row-reflected image, flattened (stride W)
    """
    HW = H * W
    C = xs_ref.shape[0]
    O = o_ref.shape[1]

    # Row halo (ReflectionPad2d semantics: mirror excluding the edge row):
    #   xs = [ row 1 | rows 0..H-1 | row H-2 ], flattened with stride W.
    xs_ref[:, pl.ds(W, HW)] = x_ref[0]
    xs_ref[:, pl.ds(0, W)] = x_ref[0, :, pl.ds(W, W)]
    xs_ref[:, pl.ds(W + HW, W)] = x_ref[0, :, pl.ds((H - 2) * W, W)]

    # Column index of every output position (p = y*W + x  ->  col = x).
    col = jax.lax.broadcasted_iota(jnp.int32, (C, HW), 1) % W
    left = col == 0
    right = col == (W - 1)

    acc = jnp.zeros((O, HW), dtype=jnp.float32)
    for ky in range(3):
        # Row slab for this ky: slab[c, p] = row_padded_flat[c, p + ky*W].
        slab = xs_ref[:, pl.ds(ky * W, HW)]            # (C, HW)
        # dx = -1 / +1 taps via lane rolls; the single wrapped lane of each
        # roll is never selected (it lands on a reflected edge column).
        slab_m1 = pltpu.roll(slab, 1, axis=1)          # slab_m1[p] = slab[p-1]
        slab_p1 = pltpu.roll(slab, HW - 1, axis=1)     # slab_p1[p] = slab[p+1]
        planes = (
            jnp.where(left, slab_p1, slab_m1),         # kx = 0 (left-edge reflect)
            slab,                                      # kx = 1
            jnp.where(right, slab_m1, slab_p1),        # kx = 2 (right-edge reflect)
        )
        for kx in range(3):
            acc = acc + jnp.dot(
                w_ref[ky, kx], planes[kx], preferred_element_type=jnp.float32
            )

    acc = acc + b_ref[...]                             # (O, 1) broadcast over lanes
    out = jnp.where(acc > 0, acc, jnp.exp(acc) - 1.0)  # fused ELU (alpha = 1)
    o_ref[0] = out.astype(o_ref.dtype)


def conv_block(x_nchw, weight_oihw, bias):
    """ConvBlock forward: ReflectionPad2d(1) -> Conv2d(3x3) -> ELU.

    x_nchw     : (N, C, H, W)
    weight_oihw: (O, C, 3, 3)   (PyTorch Conv2d layout)
    bias       : (O,)
    returns    : (N, O, H, W)
    """
    N, C, H, W = x_nchw.shape
    O = weight_oihw.shape[0]
    if H < 2 or W < 2:
        raise ValueError("reflection pad of 1 requires H, W >= 2")
    HW = H * W

    x_flat = x_nchw.reshape(N, C, HW)                  # free reshape (contiguous)
    w_k = jnp.transpose(weight_oihw, (2, 3, 0, 1))     # (3, 3, O, C), 288 floats
    b_k = bias.reshape(O, 1)

    kernel = functools.partial(_conv3x3_elu_kernel, H=H, W=W)
    out_flat = pl.pallas_call(
        kernel,
        out_shape=jax.ShapeDtypeStruct((N, O, HW), x_nchw.dtype),
        grid_spec=pltpu.PrefetchScalarGridSpec(
            num_scalar_prefetch=0,
            grid=(N,),
            in_specs=[
                pl.BlockSpec((1, C, HW), lambda n: (n, 0, 0)),
                pl.BlockSpec((3, 3, O, C), lambda n: (0, 0, 0, 0)),
                pl.BlockSpec((O, 1), lambda n: (0, 0)),
            ],
            out_specs=pl.BlockSpec((1, O, HW), lambda n: (n, 0, 0)),
            scratch_shapes=[pltpu.VMEM((C, HW + 2 * W), x_nchw.dtype)],
        ),
        compiler_params=pltpu.CompilerParams(
            dimension_semantics=("parallel",),
        ),
    )(x_flat, w_k, b_k)

    return out_flat.reshape(N, O, H, W)


def _reference_conv_block(x_nchw, weight_oihw, bias):
    """Pure-JAX reference matching the PyTorch ConvBlock forward."""
    xp = jnp.pad(x_nchw, ((0, 0), (0, 0), (1, 1), (1, 1)), mode="reflect")
    y = jax.lax.conv_general_dilated(
        xp, weight_oihw, window_strides=(1, 1), padding="VALID",
        dimension_numbers=("NCHW", "OIHW", "NCHW"),
        precision=jax.lax.Precision.HIGHEST,
    )
    y = y + bias[None, :, None, None]
    return jnp.where(y > 0, y, jnp.expm1(y))           # ELU, alpha = 1


if __name__ == "__main__":
    key = jax.random.PRNGKey(0)
    k_x, k_w, k_b = jax.random.split(key, 3)

    # Small shapes consistent with the module: in_channels=4, out_channels=8.
    N, Cin, H, W = 2, 4, 16, 16
    Cout = 8

    x = jax.random.normal(k_x, (N, Cin, H, W), dtype=jnp.float32)
    # Deterministic parameter init (PyTorch-like uniform fan-in bound).
    fan_in = Cin * 3 * 3
    bound = 1.0 / (fan_in ** 0.5)
    weight = jax.random.uniform(k_w, (Cout, Cin, 3, 3), jnp.float32, -bound, bound)
    bias = jax.random.uniform(k_b, (Cout,), jnp.float32, -bound, bound)

    out = conv_block(x, weight, bias)
    jax.block_until_ready(out)

    ref = _reference_conv_block(x, weight, bias)
    assert out.shape == (N, Cout, H, W), out.shape
    assert jnp.allclose(out, ref, atol=1e-4, rtol=1e-4), (
        "mismatch vs reference, max abs err = "
        + str(float(jnp.max(jnp.abs(out - ref)))))

    print("KERNEL_OK")
</pallas_src>

<mosaic_0001>
module attributes {stable_mosaic.version = 11 : i64} {
  func.func @_conv3x3_elu_kernel(%arg0: i32, %arg1: memref<1x4x256xf32, #tpu.memory_space<vmem>>, %arg2: memref<3x3x8x4xf32, #tpu.memory_space<vmem>>, %arg3: memref<8x1xf32, #tpu.memory_space<vmem>>, %arg4: memref<1x8x256xf32, #tpu.memory_space<vmem>>, %arg5: memref<4x288xf32, #tpu.memory_space<vmem>>) attributes {dimension_semantics = [#tpu.dimension_semantics<parallel>], iteration_bounds = array<i64: 2>, scalar_prefetch = 0 : i64, scratch_operands = 1 : i64, tpu.core_type = #tpu.core_type<tc>, window_params = [{transform_indices = @transform_0, window_bounds = array<i64: 1, 4, 256>}, {pipeline_mode = #tpu.pipeline_mode<synchronous>, transform_indices = @transform_1, window_bounds = array<i64: 3, 3, 8, 4>}, {pipeline_mode = #tpu.pipeline_mode<synchronous>, transform_indices = @transform_2, window_bounds = array<i64: 8, 1>}, {transform_indices = @transform_3, window_bounds = array<i64: 1, 8, 256>}]} {
    %c0 = arith.constant 0 : index
    %c0_0 = arith.constant 0 : index
    %c0_1 = arith.constant 0 : index
    %0 = vector.load %arg1[%c0, %c0_0, %c0_1] : memref<1x4x256xf32, #tpu.memory_space<vmem>>, vector<1x4x256xf32>
    %1 = vector.shape_cast %0 : vector<1x4x256xf32> to vector<4x256xf32>
    %c0_2 = arith.constant 0 : index
    %c16 = arith.constant 16 : index
    %2 = vector.load %arg5[%c0_2, %c16] : memref<4x288xf32, #tpu.memory_space<vmem>>, vector<4x256xf32>
    tpu.vector_store %arg5[%c0_2, %c16], %1 {strides = array<i32>} : memref<4x288xf32, #tpu.memory_space<vmem>>, vector<4x256xf32>,
    %c0_3 = arith.constant 0 : index
    %c0_4 = arith.constant 0 : index
    %c16_5 = arith.constant 16 : index
    %3 = vector.load %arg1[%c0_3, %c0_4, %c16_5] : memref<1x4x256xf32, #tpu.memory_space<vmem>>, vector<1x4x16xf32>
    %4 = vector.shape_cast %3 : vector<1x4x16xf32> to vector<4x16xf32>
    %c0_6 = arith.constant 0 : index
    %c0_7 = arith.constant 0 : index
    %5 = vector.load %arg5[%c0_6, %c0_7] : memref<4x288xf32, #tpu.memory_space<vmem>>, vector<4x16xf32>
    tpu.vector_store %arg5[%c0_6, %c0_7], %4 {strides = array<i32>} : memref<4x288xf32, #tpu.memory_space<vmem>>, vector<4x16xf32>,
    %c0_8 = arith.constant 0 : index
    %c0_9 = arith.constant 0 : index
    %c224 = arith.constant 224 : index
    %6 = vector.load %arg1[%c0_8, %c0_9, %c224] : memref<1x4x256xf32, #tpu.memory_space<vmem>>, vector<1x4x16xf32>
    %7 = vector.shape_cast %6 : vector<1x4x16xf32> to vector<4x16xf32>
    %c0_10 = arith.constant 0 : index
    %c272 = arith.constant 272 : index
    %8 = vector.load %arg5[%c0_10, %c272] : memref<4x288xf32, #tpu.memory_space<vmem>>, vector<4x16xf32>
    tpu.vector_store %arg5[%c0_10, %c272], %7 {strides = array<i32>} : memref<4x288xf32, #tpu.memory_space<vmem>>, vector<4x16xf32>,
    %9 = tpu.iota {dimensions = array<i32: 1>} : vector<4x256xi32>
    %c16_i32 = arith.constant 16 : i32
    %c0_i32 = arith.constant 0 : i32
    %10 = arith.cmpi eq, %c16_i32, %c0_i32 : i32
    %c1_i32 = arith.constant 1 : i32
    %11 = arith.select %10, %c1_i32, %c16_i32 : i32
    %12 = vector.broadcast %11 : i32 to vector<4x256xi32>
    %13 = arith.remsi %9, %12 : vector<4x256xi32>
    %c0_i32_11 = arith.constant 0 : i32
    %14 = vector.broadcast %c0_i32_11 : i32 to vector<4x256xi32>
    %15 = arith.cmpi ne, %13, %14 : vector<4x256xi32>
    %c0_i32_12 = arith.constant 0 : i32
    %16 = vector.broadcast %c0_i32_12 : i32 to vector<4x256xi32>
    %17 = arith.cmpi slt, %13, %16 : vector<4x256xi32>
    %c0_i32_13 = arith.constant 0 : i32
    %18 = arith.cmpi slt, %11, %c0_i32_13 : i32
    %19 = vector.broadcast %18 : i1 to vector<4x256xi1>
    %20 = vector.broadcast %19 : vector<4x256xi1> to vector<4x256xi1>
    %21 = arith.xori %17, %20 : vector<4x256xi1>
    %22 = arith.andi %21, %15 : vector<4x256xi1>
    %23 = vector.broadcast %11 : i32 to vector<4x256xi32>
    %24 = arith.addi %13, %23 : vector<4x256xi32>
    %25 = arith.select %22, %24, %13 : vector<4x256xi1>, vector<4x256xi32>
    %c0_i32_14 = arith.constant 0 : i32
    %26 = vector.broadcast %c0_i32_14 : i32 to vector<4x256xi32>
    %27 = arith.cmpi eq, %25, %26 : vector<4x256xi32>
    %c15_i32 = arith.constant 15 : i32
    %28 = vector.broadcast %c15_i32 : i32 to vector<4x256xi32>
    %29 = arith.cmpi eq, %25, %28 : vector<4x256xi32>
    %cst = arith.constant 0.000000e+00 : f32
    %30 = vector.broadcast %cst : f32 to vector<8x256xf32>
    %c0_15 = arith.constant 0 : index
    %c0_16 = arith.constant 0 : index
    %31 = vector.load %arg5[%c0_15, %c0_16] : memref<4x288xf32, #tpu.memory_space<vmem>>, vector<4x256xf32>
    %c1_i32_17 = arith.constant 1 : i32
    %32 = tpu.dynamic_rotate %31 by %c1_i32_17 dim 1 : vector<4x256xf32>, i32 -> vector<4x256xf32>
    %c255_i32 = arith.constant 255 : i32
    %33 = tpu.dynamic_rotate %31 by %c255_i32 dim 1 : vector<4x256xf32>, i32 -> vector<4x256xf32>
    %34 = arith.select %27, %33, %32 : vector<4x256xi1>, vector<4x256xf32>
    %35 = arith.select %29, %32, %33 : vector<4x256xi1>, vector<4x256xf32>
    %c0_18 = arith.constant 0 : index
    %c0_19 = arith.constant 0 : index
    %c0_20 = arith.constant 0 : index
    %c0_21 = arith.constant 0 : index
    %36 = vector.load %arg2[%c0_18, %c0_19, %c0_20, %c0_21] : memref<3x3x8x4xf32, #tpu.memory_space<vmem>>, vector<1x1x8x4xf32>
    %37 = vector.shape_cast %36 : vector<1x1x8x4xf32> to vector<8x4xf32>
    %cst_22 = arith.constant dense<0.000000e+00> : vector<8x256xf32>
    %38 = tpu.matmul %37, %34, %cst_22 {dimension_numbers = #tpu.dot_dimension_numbers<[1], [0], [0], [1], [0, 0, 1, 1], [], []>} : vector<8x4xf32>, vector<4x256xf32>, vector<8x256xf32> -> vector<8x256xf32>
    %39 = arith.addf %30, %38 : vector<8x256xf32>
    %c0_23 = arith.constant 0 : index
    %c1 = arith.constant 1 : index
    %c0_24 = arith.constant 0 : index
    %c0_25 = arith.constant 0 : index
    %40 = vector.load %arg2[%c0_23, %c1, %c0_24, %c0_25] : memref<3x3x8x4xf32, #tpu.memory_space<vmem>>, vector<1x1x8x4xf32>
    %41 = vector.shape_cast %40 : vector<1x1x8x4xf32> to vector<8x4xf32>
    %cst_26 = arith.constant dense<0.000000e+00> : vector<8x256xf32>
    %42 = tpu.matmul %41, %31, %cst_26 {dimension_numbers = #tpu.dot_dimension_numbers<[1], [0], [0], [1], [0, 0, 1, 1], [], []>} : vector<8x4xf32>, vector<4x256xf32>, vector<8x256xf32> -> vector<8x256xf32>
    %43 = arith.addf %39, %42 : vector<8x256xf32>
    %c0_27 = arith.constant 0 : index
    %c2 = arith.constant 2 : index
    %c0_28 = arith.constant 0 : index
    %c0_29 = arith.constant 0 : index
    %44 = vector.load %arg2[%c0_27, %c2, %c0_28, %c0_29] : memref<3x3x8x4xf32, #tpu.memory_space<vmem>>, vector<1x1x8x4xf32>
    %45 = vector.shape_cast %44 : vector<1x1x8x4xf32> to vector<8x4xf32>
    %cst_30 = arith.constant dense<0.000000e+00> : vector<8x256xf32>
    %46 = tpu.matmul %45, %35, %cst_30 {dimension_numbers = #tpu.dot_dimension_numbers<[1], [0], [0], [1], [0, 0, 1, 1], [], []>} : vector<8x4xf32>, vector<4x256xf32>, vector<8x256xf32> -> vector<8x256xf32>
    %47 = arith.addf %43, %46 : vector<8x256xf32>
    %c0_31 = arith.constant 0 : index
    %c16_32 = arith.constant 16 : index
    %48 = vector.load %arg5[%c0_31, %c16_32] : memref<4x288xf32, #tpu.memory_space<vmem>>, vector<4x256xf32>
    %c1_i32_33 = arith.constant 1 : i32
    %49 = tpu.dynamic_rotate %48 by %c1_i32_33 dim 1 : vector<4x256xf32>, i32 -> vector<4x256xf32>
    %c255_i32_34 = arith.constant 255 : i32
    %50 = tpu.dynamic_rotate %48 by %c255_i32_34 dim 1 : vector<4x256xf32>, i32 -> vector<4x256xf32>
    %51 = arith.select %27, %50, %49 : vector<4x256xi1>, vector<4x256xf32>
    %52 = arith.select %29, %49, %50 : vector<4x256xi1>, vector<4x256xf32>
    %c1_35 = arith.constant 1 : index
    %c0_36 = arith.constant 0 : index
    %c0_37 = arith.constant 0 : index
    %c0_38 = arith.constant 0 : index
    %53 = vector.load %arg2[%c1_35, %c0_36, %c0_37, %c0_38] : memref<3x3x8x4xf32, #tpu.memory_space<vmem>>, vector<1x1x8x4xf32>
    %54 = vector.shape_cast %53 : vector<1x1x8x4xf32> to vector<8x4xf32>
    %cst_39 = arith.constant dense<0.000000e+00> : vector<8x256xf32>
    %55 = tpu.matmul %54, %51, %cst_39 {dimension_numbers = #tpu.dot_dimension_numbers<[1], [0], [0], [1], [0, 0, 1, 1], [], []>} : vector<8x4xf32>, vector<4x256xf32>, vector<8x256xf32> -> vector<8x256xf32>
    %56 = arith.addf %47, %55 : vector<8x256xf32>
    %c1_40 = arith.constant 1 : index
    %c1_41 = arith.constant 1 : index
    %c0_42 = arith.constant 0 : index
    %c0_43 = arith.constant 0 : index
    %57 = vector.load %arg2[%c1_40, %c1_41, %c0_42, %c0_43] : memref<3x3x8x4xf32, #tpu.memory_space<vmem>>, vector<1x1x8x4xf32>
    %58 = vector.shape_cast %57 : vector<1x1x8x4xf32> to vector<8x4xf32>
    %cst_44 = arith.constant dense<0.000000e+00> : vector<8x256xf32>
    %59 = tpu.matmul %58, %48, %cst_44 {dimension_numbers = #tpu.dot_dimension_numbers<[1], [0], [0], [1], [0, 0, 1, 1], [], []>} : vector<8x4xf32>, vector<4x256xf32>, vector<8x256xf32> -> vector<8x256xf32>
    %60 = arith.addf %56, %59 : vector<8x256xf32>
    %c1_45 = arith.constant 1 : index
    %c2_46 = arith.constant 2 : index
    %c0_47 = arith.constant 0 : index
    %c0_48 = arith.constant 0 : index
    %61 = vector.load %arg2[%c1_45, %c2_46, %c0_47, %c0_48] : memref<3x3x8x4xf32, #tpu.memory_space<vmem>>, vector<1x1x8x4xf32>
    %62 = vector.shape_cast %61 : vector<1x1x8x4xf32> to vector<8x4xf32>
    %cst_49 = arith.constant dense<0.000000e+00> : vector<8x256xf32>
    %63 = tpu.matmul %62, %52, %cst_49 {dimension_numbers = #tpu.dot_dimension_numbers<[1], [0], [0], [1], [0, 0, 1, 1], [], []>} : vector<8x4xf32>, vector<4x256xf32>, vector<8x256xf32> -> vector<8x256xf32>
    %64 = arith.addf %60, %63 : vector<8x256xf32>
    %c0_50 = arith.constant 0 : index
    %c32 = arith.constant 32 : index
    %65 = vector.load %arg5[%c0_50, %c32] : memref<4x288xf32, #tpu.memory_space<vmem>>, vector<4x256xf32>
    %c1_i32_51 = arith.constant 1 : i32
    %66 = tpu.dynamic_rotate %65 by %c1_i32_51 dim 1 : vector<4x256xf32>, i32 -> vector<4x256xf32>
    %c255_i32_52 = arith.constant 255 : i32
    %67 = tpu.dynamic_rotate %65 by %c255_i32_52 dim 1 : vector<4x256xf32>, i32 -> vector<4x256xf32>
    %68 = arith.select %27, %67, %66 : vector<4x256xi1>, vector<4x256xf32>
    %69 = arith.select %29, %66, %67 : vector<4x256xi1>, vector<4x256xf32>
    %c2_53 = arith.constant 2 : index
    %c0_54 = arith.constant 0 : index
    %c0_55 = arith.constant 0 : index
    %c0_56 = arith.constant 0 : index
    %70 = vector.load %arg2[%c2_53, %c0_54, %c0_55, %c0_56] : memref<3x3x8x4xf32, #tpu.memory_space<vmem>>, vector<1x1x8x4xf32>
    %71 = vector.shape_cast %70 : vector<1x1x8x4xf32> to vector<8x4xf32>
    %cst_57 = arith.constant dense<0.000000e+00> : vector<8x256xf32>
    %72 = tpu.matmul %71, %68, %cst_57 {dimension_numbers = #tpu.dot_dimension_numbers<[1], [0], [0], [1], [0, 0, 1, 1], [], []>} : vector<8x4xf32>, vector<4x256xf32>, vector<8x256xf32> -> vector<8x256xf32>
    %73 = arith.addf %64, %72 : vector<8x256xf32>
    %c2_58 = arith.constant 2 : index
    %c1_59 = arith.constant 1 : index
    %c0_60 = arith.constant 0 : index
    %c0_61 = arith.constant 0 : index
    %74 = vector.load %arg2[%c2_58, %c1_59, %c0_60, %c0_61] : memref<3x3x8x4xf32, #tpu.memory_space<vmem>>, vector<1x1x8x4xf32>
    %75 = vector.shape_cast %74 : vector<1x1x8x4xf32> to vector<8x4xf32>
    %cst_62 = arith.constant dense<0.000000e+00> : vector<8x256xf32>
    %76 = tpu.matmul %75, %65, %cst_62 {dimension_numbers = #tpu.dot_dimension_numbers<[1], [0], [0], [1], [0, 0, 1, 1], [], []>} : vector<8x4xf32>, vector<4x256xf32>, vector<8x256xf32> -> vector<8x256xf32>
    %77 = arith.addf %73, %76 : vector<8x256xf32>
    %c2_63 = arith.constant 2 : index
    %c2_64 = arith.constant 2 : index
    %c0_65 = arith.constant 0 : index
    %c0_66 = arith.constant 0 : index
    %78 = vector.load %arg2[%c2_63, %c2_64, %c0_65, %c0_66] : memref<3x3x8x4xf32, #tpu.memory_space<vmem>>, vector<1x1x8x4xf32>
    %79 = vector.shape_cast %78 : vector<1x1x8x4xf32> to vector<8x4xf32>
    %cst_67 = arith.constant dense<0.000000e+00> : vector<8x256xf32>
    %80 = tpu.matmul %79, %69, %cst_67 {dimension_numbers = #tpu.dot_dimension_numbers<[1], [0], [0], [1], [0, 0, 1, 1], [], []>} : vector<8x4xf32>, vector<4x256xf32>, vector<8x256xf32> -> vector<8x256xf32>
    %81 = arith.addf %77, %80 : vector<8x256xf32>
    %c0_68 = arith.constant 0 : index
    %c0_69 = arith.constant 0 : index
    %82 = vector.load %arg3[%c0_68, %c0_69] : memref<8x1xf32, #tpu.memory_space<vmem>>, vector<8x1xf32>
    %83 = vector.broadcast %82 : vector<8x1xf32> to vector<8x256xf32>
    %84 = arith.addf %81, %83 : vector<8x256xf32>
    %cst_70 = arith.constant 0.000000e+00 : f32
    %85 = vector.broadcast %cst_70 : f32 to vector<8x256xf32>
    %86 = arith.cmpf ogt, %84, %85 : vector<8x256xf32>
    %87 = math.exp %84 : vector<8x256xf32>
    %cst_71 = arith.constant 1.000000e+00 : f32
    %88 = vector.broadcast %cst_71 : f32 to vector<8x256xf32>
    %89 = arith.subf %87, %88 : vector<8x256xf32>
    %90 = arith.select %86, %84, %89 : vector<8x256xi1>, vector<8x256xf32>
    %c0_72 = arith.constant 0 : index
    %c0_73 = arith.constant 0 : index
    %c0_74 = arith.constant 0 : index
    %91 = vector.load %arg4[%c0_72, %c0_73, %c0_74] : memref<1x8x256xf32, #tpu.memory_space<vmem>>, vector<1x8x256xf32>
    %92 = vector.shape_cast %91 : vector<1x8x256xf32> to vector<8x256xf32>
    %93 = vector.shape_cast %90 : vector<8x256xf32> to vector<1x8x256xf32>
    tpu.vector_store %arg4[%c0_72, %c0_73, %c0_74], %93 {strides = array<i32>} : memref<1x8x256xf32, #tpu.memory_space<vmem>>, vector<1x8x256xf32>,
    return
  }
  func.func @transform_0(%arg0: i32) -> (i32, i32, i32) {
    %c0_i32 = arith.constant 0 : i32
    %c0_i32_0 = arith.constant 0 : i32
    %c0_i32_1 = arith.constant 0 : i32
    return %arg0, %c0_i32, %c0_i32_0 : i32, i32, i32
  }
  func.func @transform_1(%arg0: i32) -> (i32, i32, i32, i32) {
    %c0_i32 = arith.constant 0 : i32
    %c0_i32_0 = arith.constant 0 : i32
    %c0_i32_1 = arith.constant 0 : i32
    %c0_i32_2 = arith.constant 0 : i32
    %c0_i32_3 = arith.constant 0 : i32
    return %c0_i32, %c0_i32_0, %c0_i32_1, %c0_i32_2 : i32, i32, i32, i32
  }
  func.func @transform_2(%arg0: i32) -> (i32, i32) {
    %c0_i32 = arith.constant 0 : i32
    %c0_i32_0 = arith.constant 0 : i32
    %c0_i32_1 = arith.constant 0 : i32
    return %c0_i32, %c0_i32_0 : i32, i32
  }
  func.func @transform_3(%arg0: i32) -> (i32, i32, i32) {
    %c0_i32 = arith.constant 0 : i32
    %c0_i32_0 = arith.constant 0 : i32
    %c0_i32_1 = arith.constant 0 : i32
    return %arg0, %c0_i32, %c0_i32_0 : i32, i32, i32
  }
}

</mosaic_0001>

<llo_original>
// kernel: tpu_custom_call.1
$region0: #{tpu_custom_call.1}
  #allocation0 [shape = 'u32[]', space=smem, size = 0x4, offset = 0x4, fixed_abs, tag = 'smem constant byte address 0x4 - core index']
  #allocation1 [shape = 'u32[144,128]{1,0:T(1,128)}', space=vmem, size = 0x12000, scoped, tag = 'internal scratch']
  #allocation2 [shape = 'f32[4,288]{1,0:T(4,128)}', space=vmem, size = 0x1800, scoped, tag = 'scratch operand']
  %s0 = inlined_call_operand.vmem [shape: f32[2,4,256], index: 0, kind: input, shape index: {}]
  %s1 = inlined_call_operand.vmem [shape: f32[3,3,8,4], index: 1, kind: input, shape index: {}]
  %s2 = inlined_call_operand.vmem [shape: f32[8,1], index: 2, kind: input, shape index: {}]
  %s3 = inlined_call_operand.hbm [shape: f32[2,8,256], index: 3, kind: output, shape index: {}]
  %s4 = sld [smem:[#allocation0]]
  $region45: #{tpu_custom_call.1} parent=0
    _
  %s6 = ssub.s32 1, %s4
  %s7 = scalar_select 0, %s6, %s4
  $region1: #{tpu_custom_call.1} parent=0
    #allocation3 [shape = 'u8[16384]{0}', space=vmem, size = 0x4000, scoped, tag = 'output window, operand 0']
    #allocation4 [shape = 's32[2]{0}', space=sflag, size = 0x8, scoped, tag = 'scoped memory for tpu_custom_call.1']
    %8 = vsyncpa [#allocation4], 0
    %s9 = scalar_lea.sflag [#allocation4], 1
    %10 = vsyncpa %s9, 0
    loop: start=0, step=1, limit=4
    $region2: #{tpu_custom_call.1} parent=1 // loop_pre_header
      _
    $region3: #{tpu_custom_call.1} parent=1 // loop_header
      %s12 = sphi 0, %s16
      %p13 = scmp.ge.s32.totalorder %s12, 4
      %s22 = sphi 0, %s24
      %s25 = sphi 0, %s22
      %s26 = sphi 0, %s25
      %s42 = sphi 0, %s26
      %s46 = sphi 0, %s46
      %s48 = sphi 0, %s46
      %s49 = sphi 0, %s48
      %s63 = sphi 0, %s49
      %s67 = sphi 0, %s67
      %s69 = sphi 0, %s67
      %s70 = sphi 0, %s69
      %s84 = sphi 0, %s70
      %s90 = sphi 0, %s92
      %s93 = sphi 0, %s90
      %s94 = sphi 0, %s93
      %s110 = sphi 0, %s94
    $region4: #{tpu_custom_call.1} parent=1 // loop_header_branch
      %15 = sbr.rel (%p13) target = $region8
    $region5: #{tpu_custom_call.1} parent=1 // loop_body
      %s17 = ssub.s32 %s12, 1
      %s18 = ssub.s32 %s12, 2
      %s19 = sadd.s32 %s12, 1
      %s20 = ssub.s32 %s12, %s19
      %p21 = scmp.eq.s32.totalorder %s20, 0
      %s23 = sadd.s32 %s22, 1
      %s24 = scalar_select %p21, %s22, %s23
      %p27 = pneg %p21
      %p28 = scmp.eq.s32.totalorder %s12, 1
      %p29 = por %p27, %p28
      %p30 = scmp.ne.s32.totalorder %s22, %s25
      %p31 = scmp.eq.s32.totalorder %s12, 0
      %p32 = por %p30, %p31
      %p33 = scmp.ne.s32.totalorder %s22, %s25
      %p34 = scmp.eq.s32.totalorder %s17, 1
      %p35 = por %p33, %p34
      %p36 = scmp.ne.s32.totalorder %s25, %s26
      %p37 = scmp.eq.s32.totalorder %s17, 0
      %p38 = por %p36, %p37
      %p39 = scmp.ne.s32.totalorder %s25, %s26
      %p40 = scmp.eq.s32.totalorder %s18, 1
      %p41 = por %p39, %p40
      %p43 = scmp.ne.s32.totalorder %s26, %s42
      %p44 = scmp.eq.s32.totalorder %s18, 0
      %p45 = por %p43, %p44
      %s47 = sadd.s32 %s46, 1
      %p50 = scmp.eq.s32.totalorder %s12, 1
      %p51 = scmp.ne.s32.totalorder %s46, %s48
      %p52 = scmp.eq.s32.totalorder %s12, 0
      %p53 = por %p51, %p52
      %p54 = scmp.ne.s32.totalorder %s46, %s48
      %p55 = scmp.eq.s32.totalorder %s17, 1
      %p56 = por %p54, %p55
      %p57 = scmp.ne.s32.totalorder %s48, %s49
      %p58 = scmp.eq.s32.totalorder %s17, 0
      %p59 = por %p57, %p58
      %p60 = scmp.ne.s32.totalorder %s48, %s49
      %p61 = scmp.eq.s32.totalorder %s18, 1
      %p62 = por %p60, %p61
      %p64 = scmp.ne.s32.totalorder %s49, %s63
      %p65 = scmp.eq.s32.totalorder %s18, 0
      %p66 = por %p64, %p65
      %s68 = sadd.s32 %s67, 1
      %p71 = scmp.eq.s32.totalorder %s12, 1
      %p72 = scmp.ne.s32.totalorder %s67, %s69
      %p73 = scmp.eq.s32.totalorder %s12, 0
      %p74 = por %p72, %p73
      %p75 = scmp.ne.s32.totalorder %s67, %s69
      %p76 = scmp.eq.s32.totalorder %s17, 1
      %p77 = por %p75, %p76
      %p78 = scmp.ne.s32.totalorder %s69, %s70
      %p79 = scmp.eq.s32.totalorder %s17, 0
      %p80 = por %p78, %p79
      %p81 = scmp.ne.s32.totalorder %s69, %s70
      %p82 = scmp.eq.s32.totalorder %s18, 1
      %p83 = por %p81, %p82
      %p85 = scmp.ne.s32.totalorder %s70, %s84
      %p86 = scmp.eq.s32.totalorder %s18, 0
      %p87 = por %p85, %p86
      %s88 = ssub.s32 %s12, %s19
      %p89 = scmp.eq.s32.totalorder %s88, 0
      %s91 = sadd.s32 %s90, 1
      %s92 = scalar_select %p89, %s90, %s91
      %p95 = pneg %p89
      %p96 = scmp.eq.s32.totalorder %s12, 1
      %p97 = por %p95, %p96
      %p98 = scmp.ne.s32.totalorder %s90, %s93
      %p99 = scmp.eq.s32.totalorder %s12, 0
      %p100 = por %p98, %p99
      %p101 = scmp.ne.s32.totalorder %s90, %s93
      %p102 = scmp.eq.s32.totalorder %s17, 1
      %p103 = por %p101, %p102
      %p104 = scmp.ne.s32.totalorder %s93, %s94
      %p105 = scmp.eq.s32.totalorder %s17, 0
      %p106 = por %p104, %p105
      %p107 = scmp.ne.s32.totalorder %s93, %s94
      %p108 = scmp.eq.s32.totalorder %s18, 1
      %p109 = por %p107, %p108
      %p111 = scmp.ne.s32.totalorder %s94, %s110
      %p112 = scmp.eq.s32.totalorder %s18, 0
      %p113 = por %p111, %p112
      %p114 = scmp.le.s32.totalorder 1, %s12
      %p115 = scmp.lt.s32.totalorder %s12, 3
      %p116 = pnand %p114, %p115
      %p117 = pneg %p116
      // Predicated region
      $region9: #{tpu_custom_call.1} parent=5 // pred_check
        _
      $region10: #{tpu_custom_call.1} parent=5 // pred_check_branch
        %119 = sbr.rel (%p116) target = $region12
      $region11: #{tpu_custom_call.1} parent=5 // pred_region
        %s120 = ssub.s32 %s12, 1
        // Predicated region
        $region13: #{tpu_custom_call.1} parent=11 // pred_check
          %p121 = pneg %p59
        $region14: #{tpu_custom_call.1} parent=11 // pred_check_branch
          %123 = sbr.rel (%p121) target = $region16
        $region15: #{tpu_custom_call.1} parent=11 // pred_region
          _
        $region16: #{tpu_custom_call.1} parent=11 // pred_fallthru
          _
        // Predicated region
        $region17: #{tpu_custom_call.1} parent=11 // pred_check
          %p124 = pneg %p80
        $region18: #{tpu_custom_call.1} parent=11 // pred_check_branch
          %126 = sbr.rel (%p124) target = $region20
        $region19: #{tpu_custom_call.1} parent=11 // pred_region
          _
        $region20: #{tpu_custom_call.1} parent=11 // pred_fallthru
          _
      $region12: #{tpu_custom_call.1} parent=5 // pred_fallthru
        _
      %p127 = scmp.lt.s32.totalorder %s12, 2
      // Predicated region
      $region21: #{tpu_custom_call.1} parent=5 // pred_check
        %p128 = pneg %p127
      $region22: #{tpu_custom_call.1} parent=5 // pred_check_branch
        %130 = sbr.rel (%p128) target = $region24
      $region23: #{tpu_custom_call.1} parent=5 // pred_region
        // Predicated region
        $region25: #{tpu_custom_call.1} parent=23 // pred_check
          %p131 = pneg %p32
        $region26: #{tpu_custom_call.1} parent=23 // pred_check_branch
          %133 = sbr.rel (%p131) target = $region28
        $region27: #{tpu_custom_call.1} parent=23 // pred_region
          %p134 = scmp.lt.s32.totalorder %s12, 1
          %s135 = scalar_select %p134, %s12, 1
          %s136 = smul.addr %s135, 2
          %s137 = smul.addr %s136, 4
          %s138 = scalar_lea.vmem %s0, %s137
        $region28: #{tpu_custom_call.1} parent=23 // pred_fallthru
          _
      $region24: #{tpu_custom_call.1} parent=5 // pred_fallthru
        _
      %p139 = scmp.le.s32.totalorder 1, %s12
      %p140 = scmp.lt.s32.totalorder %s12, 3
      %p141 = pnand %p139, %p140
      %p142 = pneg %p141
      // Predicated region
      $region29: #{tpu_custom_call.1} parent=5 // pred_check
        _
      $region30: #{tpu_custom_call.1} parent=5 // pred_check_branch
        %144 = sbr.rel (%p141) target = $region32
      $region31: #{tpu_custom_call.1} parent=5 // pred_region
        %s145 = ssub.s32 %s12, 1
        %p146 = scmp.lt.s32.totalorder %s17, 1
        %s147 = scalar_select %p146, %s17, 1
        %s148 = smul.addr %s147, 2
        %s149 = smul.addr %s148, 4
        %s150 = scalar_lea.vmem %s0, %s149
        %p151 = pneg %p38
        %p152 = pneg %p35
        %p153 = pneg %p59
        %p154 = pneg %p56
        %p155 = pneg %p80
        %p156 = pneg %p77
        %p157 = pneg %p106
        %p158 = pneg %p103
        %s159 = sand.u32 %s93, 1
        %s160 = scalar_lea.sflag [#allocation4], %s159
        %s161 = sand.u32 %s93, 1
        %s162 = smul.addr %s161, 16
        %s163 = scalar_lea.vmem [#allocation3], %s162
        %p164 = scmp.lt.s32.totalorder %s17, 1
        %s165 = scalar_select %p164, %s17, 1
        %s166 = smul.addr %s165, 2
        %s167 = smul.addr %s166, 4
        %s168 = scalar_lea.vmem %s0, %s167
        %v169 = vld [vmem:[%s168] sm:$0xff]
        %171 = vrot.lane.b32.xlu0 %v169, 16
        %v172 = vpop.permute.xlu0 %171
        %v173 = vrot.slane %v172, 4
        %vm174 = vcmask 130048
        %v175 = vsel %vm174, %v173, %v172
        %vm178 = vcmask 1043584
        %vm179 = vcmask 1047556
        %vm180 = vmor %vm179, %vm178
        %181 = vst.msk [vmem:[#allocation2] sm:$0xff] %vm180, %v175
        %vm182 = vcmask 125952
        %183 = vst.msk [vmem:[#allocation2 + $0x8] sm:$0xf] %vm182, %v173
        %v184 = vld [vmem:[%s168] sm:$0xf]
        %186 = vrot.lane.b32.xlu0 %v184, 112
        %v187 = vpop.permute.xlu0 %186
        %189 = vst.msk [vmem:[#allocation2] sm:$0xf] %vm182, %v187
        %v190 = vld [vmem:[%s168 + $0x4] sm:$0xf]
        %192 = vrot.lane.b32.xlu0 %v190, 48
        %v193 = vpop.permute.xlu0 %192
        %vm195 = vcmask 257152
        %196 = vst.msk [vmem:[#allocation2 + $0x8] sm:$0xf] %vm195, %v193
        %v197 = vlaneseq
        %v198 = vand.u32 %v197, 127
        %v199 = vadd.s32 %v198, 128
        %vm200 = vcmp.lt.s32.totalorder %v198, 0
        %v201 = vsub.s32 0, %v198
        %v202 = vsel %vm200, %v201, %v198
        %v203 = vshrl.u32 %v202, 4
        %v204 = vand.u32 %v202, 15
        %v205 = vsub.s32 0, %v204
        %v206 = vsel %vm200, %v205, %v204
        %vm207 = vcmp.lt.s32.totalorder %v199, 0
        %v208 = vsub.s32 0, %v199
        %v209 = vsel %vm207, %v208, %v199
        %v210 = vshrl.u32 %v209, 4
        %v211 = vand.u32 %v209, 15
        %v212 = vsub.s32 0, %v211
        %v213 = vsel %vm207, %v212, %v211
        %vm214 = vcmp.ne.s32.totalorder %v206, 0
        %vm215 = vcmp.ne.s32.totalorder %v213, 0
        %vm216 = vcmp.lt.s32.totalorder %v206, 0
        %vm217 = vcmp.lt.s32.totalorder %v213, 0
        %vm218 = vmand %vm216, %vm214
        %vm219 = vmand %vm217, %vm215
        %v220 = vadd.s32 %v206, 16
        %v221 = vadd.s32 %v213, 16
        %v222 = vsel %vm218, %v220, %v206
        %v223 = vsel %vm219, %v221, %v213
        %vm224 = vcmp.eq.s32.totalorder %v222, 0
        %vm225 = vcmp.eq.s32.totalorder %v223, 0
        %vm226 = vcmp.eq.s32.totalorder %v222, 15
        %vm227 = vcmp.eq.s32.totalorder %v223, 15
        %v228 = vld [vmem:[#allocation2] sm:$0xff]
        %v230 = vcombine.high %v228, %v228
        %232 = vrot.lane.b32.xlu0 %v228, 1
        %v233 = vpop.permute.xlu0 %232
        %234 = vrot.lane.b32.xlu0 %v230, 1
        %v235 = vpop.permute.xlu0 %234
        %vm236 = vcmp.lt.s32.totalorder %v198, 1
        %v237 = vsel %vm236, %v233, %v235
        %v238 = vsel %vm236, %v235, %v233
        %239 = vrot.lane.b32.xlu0 %v228, 127
        %v240 = vpop.permute.xlu0 %239
        %241 = vrot.lane.b32.xlu0 %v230, 127
        %v242 = vpop.permute.xlu0 %241
        %vm243 = vcmp.lt.s32.totalorder %v198, 127
        %v244 = vsel %vm243, %v240, %v242
        %v245 = vsel %vm243, %v242, %v240
        %v246 = vsel %vm224, %v244, %v238
        %v247 = vsel %vm225, %v245, %v237
        %v248 = vsel %vm226, %v238, %v244
        %v249 = vsel %vm227, %v237, %v245
        %v250 = vld [vmem:[%s1] sm:$0xff]
        %s251 = scalar_lea.vmem %s1, 8
        %v252 = vld [vmem:[%s251] sm:$0xff]
        %vm253 = vcmask 31744
        %v255 = vsel %vm253, %v252, 0
        %vm257 = vcmask 1043456
        %v258 = vsel %vm257, %v228, 0
        %v260 = vsel %vm257, %v230, 0
        %262 = vmatprep.subr.mxu0 %v260
        %263 = vmatpush1.msra.mxu0 %v258
        %264 = vmatprep.subr.mxu0 0.0
        %265 = vmatpush1.msra.mxu0 0.0
        %266 = vmatprep.subr.mxu0 0.0
        %267 = vmatpush1.msra.mxu0 0.0
        %268 = vmatprep.subr.mxu0 0.0
        %269 = vmatpush1.msra.mxu0 0.0
        %270 = vmatprep.subr.mxu0 0.0
        %271 = vmatpush1.msra.mxu0 0.0
        %272 = vmatprep.subr.mxu0 0.0
        %273 = vmatpush1.msra.mxu0 0.0
        %274 = vmatprep.subr.mxu0 0.0
        %275 = vmatpush1.msra.mxu0 0.0
        %276 = vmatprep.subr.mxu0 0.0
        %277 = vmatpush1.msra.mxu0 0.0
        %278 = vmatprep.subr.mxu0 0.0
        %279 = vmatpush1.msra.mxu0 0.0
        %280 = vmatprep.subr.mxu0 0.0
        %281 = vmatpush1.msra.mxu0 0.0
        %282 = vmatprep.subr.mxu0 0.0
        %283 = vmatpush1.msra.mxu0 0.0
        %284 = vmatprep.subr.mxu0 0.0
        %285 = vmatpush1.msra.mxu0 0.0
        %286 = vmatprep.subr.mxu0 0.0
        %287 = vmatpush1.msra.mxu0 0.0
        %288 = vmatprep.subr.mxu0 0.0
        %289 = vmatpush1.msra.mxu0 0.0
        %290 = vmatprep.subr.mxu0 0.0
        %291 = vmatpush1.msra.mxu0 0.0
        %292 = vmatprep.subr.mxu0 0.0
        %293 = vmatpush1.msra.mxu0 0.0
        %294 = vmatprep.subr.mxu0 0.0
        %295 = vmatpush1.msra.mxu0 0.0
        %296 = vmatprep.subr.mxu0 0.0
        %297 = vmatpush1.msra.mxu0 0.0
        %298 = vmatprep.subr.mxu0 0.0
        %299 = vmatpush1.msra.mxu0 0.0
        %300 = vmatprep.subr.mxu0 0.0
        %301 = vmatpush1.msra.mxu0 0.0
        %302 = vmatprep.subr.mxu0 0.0
        %303 = vmatpush1.msra.mxu0 0.0
        %304 = vmatprep.subr.mxu0 0.0
        %305 = vmatpush1.msra.mxu0 0.0
        %306 = vmatprep.subr.mxu0 0.0
        %307 = vmatpush1.msra.mxu0 0.0
        %308 = vmatprep.subr.mxu0 0.0
        %309 = vmatpush1.msra.mxu0 0.0
        %310 = vmatprep.subr.mxu0 0.0
        %311 = vmatpush1.msra.mxu0 0.0
        %312 = vmatprep.subr.mxu0 0.0
        %313 = vmatpush1.msra.mxu0 0.0
        %314 = vmatprep.subr.mxu0 0.0
        %315 = vmatpush1.msra.mxu0 0.0
        %316 = vmatprep.subr.mxu0 0.0
        %317 = vmatpush1.msra.mxu0 0.0
        %318 = vmatprep.subr.mxu0 0.0
        %319 = vmatpush1.msra.mxu0 0.0
        %320 = vmatprep.subr.mxu0 0.0
        %321 = vmatpush1.msra.mxu0 0.0
        %322 = vmatprep.subr.mxu0 0.0
        %323 = vmatpush1.msra.mxu0 0.0
        %324 = vmatprep.subr.mxu0 0.0
        %325 = vmatpush1.msra.mxu0 0.0
        %326 = vmatprep.mubr.f32.mxu0 0.0
        %327 = vmatmul.mubr.f32.gmra.mrb[0].mxu0 %v255
        %v328 = vpop.f32.mrb[0].mxu0
        %v329 = vadd.f32 0.0, %v328
        %v330 = vpop.f32.mrb[0].mxu0
        %v331 = vadd.f32 0.0, %v330
        %332 = vdwg.mxu0
        %v334 = vsel %vm253, %v250, 0
        %v337 = vsel %vm257, %v246, 0
        %v340 = vsel %vm257, %v247, 0
        %342 = vmatprep.subr.mxu0 %v340
        %343 = vmatpush1.msra.mxu0 %v337
        %344 = vmatprep.subr.mxu0 0.0
        %345 = vmatpush1.msra.mxu0 0.0
        %346 = vmatprep.subr.mxu0 0.0
        %347 = vmatpush1.msra.mxu0 0.0
        %348 = vmatprep.subr.mxu0 0.0
        %349 = vmatpush1.msra.mxu0 0.0
        %350 = vmatprep.subr.mxu0 0.0
        %351 = vmatpush1.msra.mxu0 0.0
        %352 = vmatprep.subr.mxu0 0.0
        %353 = vmatpush1.msra.mxu0 0.0
        %354 = vmatprep.subr.mxu0 0.0
        %355 = vmatpush1.msra.mxu0 0.0
        %356 = vmatprep.subr.mxu0 0.0
        %357 = vmatpush1.msra.mxu0 0.0
        %358 = vmatprep.subr.mxu0 0.0
        %359 = vmatpush1.msra.mxu0 0.0
        %360 = vmatprep.subr.mxu0 0.0
        %361 = vmatpush1.msra.mxu0 0.0
        %362 = vmatprep.subr.mxu0 0.0
        %363 = vmatpush1.msra.mxu0 0.0
        %364 = vmatprep.subr.mxu0 0.0
        %365 = vmatpush1.msra.mxu0 0.0
        %366 = vmatprep.subr.mxu0 0.0
        %367 = vmatpush1.msra.mxu0 0.0
        %368 = vmatprep.subr.mxu0 0.0
        %369 = vmatpush1.msra.mxu0 0.0
        %370 = vmatprep.subr.mxu0 0.0
        %371 = vmatpush1.msra.mxu0 0.0
        %372 = vmatprep.subr.mxu0 0.0
        %373 = vmatpush1.msra.mxu0 0.0
        %374 = vmatprep.subr.mxu0 0.0
        %375 = vmatpush1.msra.mxu0 0.0
        %376 = vmatprep.subr.mxu0 0.0
        %377 = vmatpush1.msra.mxu0 0.0
        %378 = vmatprep.subr.mxu0 0.0
        %379 = vmatpush1.msra.mxu0 0.0
        %380 = vmatprep.subr.mxu0 0.0
        %381 = vmatpush1.msra.mxu0 0.0
        %382 = vmatprep.subr.mxu0 0.0
        %383 = vmatpush1.msra.mxu0 0.0
        %384 = vmatprep.subr.mxu0 0.0
        %385 = vmatpush1.msra.mxu0 0.0
        %386 = vmatprep.subr.mxu0 0.0
        %387 = vmatpush1.msra.mxu0 0.0
        %388 = vmatprep.subr.mxu0 0.0
        %389 = vmatpush1.msra.mxu0 0.0
        %390 = vmatprep.subr.mxu0 0.0
        %391 = vmatpush1.msra.mxu0 0.0
        %392 = vmatprep.subr.mxu0 0.0
        %393 = vmatpush1.msra.mxu0 0.0
        %394 = vmatprep.subr.mxu0 0.0
        %395 = vmatpush1.msra.mxu0 0.0
        %396 = vmatprep.subr.mxu0 0.0
        %397 = vmatpush1.msra.mxu0 0.0
        %398 = vmatprep.subr.mxu0 0.0
        %399 = vmatpush1.msra.mxu0 0.0
        %400 = vmatprep.subr.mxu0 0.0
        %401 = vmatpush1.msra.mxu0 0.0
        %402 = vmatprep.subr.mxu0 0.0
        %403 = vmatpush1.msra.mxu0 0.0
        %404 = vmatprep.subr.mxu0 0.0
        %405 = vmatpush1.msra.mxu0 0.0
        %406 = vmatprep.mubr.f32.mxu0 0.0
        %407 = vmatmul.mubr.f32.gmra.mrb[0].mxu0 %v334
        %v408 = vpop.f32.mrb[0].mxu0
        %v409 = vadd.f32 %v329, %v408
        %v410 = vpop.f32.mrb[0].mxu0
        %v411 = vadd.f32 %v331, %v410
        %412 = vdwg.mxu0
        %s413 = scalar_lea.vmem %s1, 16
        %v414 = vld [vmem:[%s413] sm:$0xff]
        %v416 = vsel %vm253, %v414, 0
        %v419 = vsel %vm257, %v248, 0
        %v422 = vsel %vm257, %v249, 0
        %424 = vmatprep.subr.mxu0 %v422
        %425 = vmatpush1.msra.mxu0 %v419
        %426 = vmatprep.subr.mxu0 0.0
        %427 = vmatpush1.msra.mxu0 0.0
        %428 = vmatprep.subr.mxu0 0.0
        %429 = vmatpush1.msra.mxu0 0.0
        %430 = vmatprep.subr.mxu0 0.0
        %431 = vmatpush1.msra.mxu0 0.0
        %432 = vmatprep.subr.mxu0 0.0
        %433 = vmatpush1.msra.mxu0 0.0
        %434 = vmatprep.subr.mxu0 0.0
        %435 = vmatpush1.msra.mxu0 0.0
        %436 = vmatprep.subr.mxu0 0.0
        %437 = vmatpush1.msra.mxu0 0.0
        %438 = vmatprep.subr.mxu0 0.0
        %439 = vmatpush1.msra.mxu0 0.0
        %440 = vmatprep.subr.mxu0 0.0
        %441 = vmatpush1.msra.mxu0 0.0
        %442 = vmatprep.subr.mxu0 0.0
        %443 = vmatpush1.msra.mxu0 0.0
        %444 = vmatprep.subr.mxu0 0.0
        %445 = vmatpush1.msra.mxu0 0.0
        %446 = vmatprep.subr.mxu0 0.0
        %447 = vmatpush1.msra.mxu0 0.0
        %448 = vmatprep.subr.mxu0 0.0
        %449 = vmatpush1.msra.mxu0 0.0
        %450 = vmatprep.subr.mxu0 0.0
        %451 = vmatpush1.msra.mxu0 0.0
        %452 = vmatprep.subr.mxu0 0.0
        %453 = vmatpush1.msra.mxu0 0.0
        %454 = vmatprep.subr.mxu0 0.0
        %455 = vmatpush1.msra.mxu0 0.0
        %456 = vmatprep.subr.mxu0 0.0
        %457 = vmatpush1.msra.mxu0 0.0
        %458 = vmatprep.subr.mxu0 0.0
        %459 = vmatpush1.msra.mxu0 0.0
        %460 = vmatprep.subr.mxu0 0.0
        %461 = vmatpush1.msra.mxu0 0.0
        %462 = vmatprep.subr.mxu0 0.0
        %463 = vmatpush1.msra.mxu0 0.0
        %464 = vmatprep.subr.mxu0 0.0
        %465 = vmatpush1.msra.mxu0 0.0
        %466 = vmatprep.subr.mxu0 0.0
        %467 = vmatpush1.msra.mxu0 0.0
        %468 = vmatprep.subr.mxu0 0.0
        %469 = vmatpush1.msra.mxu0 0.0
        %470 = vmatprep.subr.mxu0 0.0
        %471 = vmatpush1.msra.mxu0 0.0
        %472 = vmatprep.subr.mxu0 0.0
        %473 = vmatpush1.msra.mxu0 0.0
        %474 = vmatprep.subr.mxu0 0.0
        %475 = vmatpush1.msra.mxu0 0.0
        %476 = vmatprep.subr.mxu0 0.0
        %477 = vmatpush1.msra.mxu0 0.0
        %478 = vmatprep.subr.mxu0 0.0
        %479 = vmatpush1.msra.mxu0 0.0
        %480 = vmatprep.subr.mxu0 0.0
        %481 = vmatpush1.msra.mxu0 0.0
        %482 = vmatprep.subr.mxu0 0.0
        %483 = vmatpush1.msra.mxu0 0.0
        %484 = vmatprep.subr.mxu0 0.0
        %485 = vmatpush1.msra.mxu0 0.0
        %486 = vmatprep.subr.mxu0 0.0
        %487 = vmatpush1.msra.mxu0 0.0
        %488 = vmatprep.mubr.f32.mxu0 0.0
        %489 = vmatmul.mubr.f32.gmra.mrb[0].mxu0 %v416
        %v490 = vpop.f32.mrb[0].mxu0
        %v491 = vadd.f32 0.0, %v490
        %v492 = vpop.f32.mrb[0].mxu0
        %v493 = vadd.f32 0.0, %v492
        %494 = vdwg.mxu0
        %v495 = vadd.f32 %v409, %v491
        %v496 = vadd.f32 %v411, %v493
        %v497 = vld [vmem:[#allocation2] sm:$0xff]
        %v498 = vld [vmem:[#allocation2 + $0x8] sm:$0xf]
        %v501 = vcombine.high %v497, %v497
        %502 = vrot.lane.b32.xlu0 %v497, 112
        %v503 = vpop.permute.xlu0 %502
        %504 = vrot.lane.b32.xlu0 %v501, 112
        %v505 = vpop.permute.xlu0 %504
        %506 = vrot.lane.b32.xlu0 %v498, 112
        %v507 = vpop.permute.xlu0 %506
        %vm508 = vcmask 916480
        %v509 = vsel %vm508, %v503, %v505
        %v510 = vsel %vm508, %v505, %v507
        %513 = vrot.lane.b32.xlu0 %v509, 1
        %v514 = vpop.permute.xlu0 %513
        %515 = vrot.lane.b32.xlu0 %v510, 1
        %v516 = vpop.permute.xlu0 %515
        %v517 = vsel %vm236, %v514, %v516
        %v518 = vsel %vm236, %v516, %v514
        %519 = vrot.lane.b32.xlu0 %v509, 127
        %v520 = vpop.permute.xlu0 %519
        %521 = vrot.lane.b32.xlu0 %v510, 127
        %v522 = vpop.permute.xlu0 %521
        %v523 = vsel %vm243, %v520, %v522
        %v524 = vsel %vm243, %v522, %v520
        %v525 = vsel %vm224, %v523, %v518
        %v526 = vsel %vm225, %v524, %v517
        %v527 = vsel %vm226, %v518, %v523
        %v528 = vsel %vm227, %v517, %v524
        %s529 = scalar_lea.vmem %s1, 24
        %v530 = vld [vmem:[%s529] sm:$0xff]
        %v532 = vsel %vm253, %v530, 0
        %v535 = vsel %vm257, %v525, 0
        %v538 = vsel %vm257, %v526, 0
        %540 = vmatprep.subr.mxu0 %v538
        %541 = vmatpush1.msra.mxu0 %v535
        %542 = vmatprep.subr.mxu0 0.0
        %543 = vmatpush1.msra.mxu0 0.0
        %544 = vmatprep.subr.mxu0 0.0
        %545 = vmatpush1.msra.mxu0 0.0
        %546 = vmatprep.subr.mxu0 0.0
        %547 = vmatpush1.msra.mxu0 0.0
        %548 = vmatprep.subr.mxu0 0.0
        %549 = vmatpush1.msra.mxu0 0.0
        %550 = vmatprep.subr.mxu0 0.0
        %551 = vmatpush1.msra.mxu0 0.0
        %552 = vmatprep.subr.mxu0 0.0
        %553 = vmatpush1.msra.mxu0 0.0
        %554 = vmatprep.subr.mxu0 0.0
        %555 = vmatpush1.msra.mxu0 0.0
        %556 = vmatprep.subr.mxu0 0.0
        %557 = vmatpush1.msra.mxu0 0.0
        %558 = vmatprep.subr.mxu0 0.0
        %559 = vmatpush1.msra.mxu0 0.0
        %560 = vmatprep.subr.mxu0 0.0
        %561 = vmatpush1.msra.mxu0 0.0
        %562 = vmatprep.subr.mxu0 0.0
        %563 = vmatpush1.msra.mxu0 0.0
        %564 = vmatprep.subr.mxu0 0.0
        %565 = vmatpush1.msra.mxu0 0.0
        %566 = vmatprep.subr.mxu0 0.0
        %567 = vmatpush1.msra.mxu0 0.0
        %568 = vmatprep.subr.mxu0 0.0
        %569 = vmatpush1.msra.mxu0 0.0
        %570 = vmatprep.subr.mxu0 0.0
        %571 = vmatpush1.msra.mxu0 0.0
        %572 = vmatprep.subr.mxu0 0.0
        %573 = vmatpush1.msra.mxu0 0.0
        %574 = vmatprep.subr.mxu0 0.0
        %575 = vmatpush1.msra.mxu0 0.0
        %576 = vmatprep.subr.mxu0 0.0
        %577 = vmatpush1.msra.mxu0 0.0
        %578 = vmatprep.subr.mxu0 0.0
        %579 = vmatpush1.msra.mxu0 0.0
        %580 = vmatprep.subr.mxu0 0.0
        %581 = vmatpush1.msra.mxu0 0.0
        %582 = vmatprep.subr.mxu0 0.0
        %583 = vmatpush1.msra.mxu0 0.0
        %584 = vmatprep.subr.mxu0 0.0
        %585 = vmatpush1.msra.mxu0 0.0
        %586 = vmatprep.subr.mxu0 0.0
        %587 = vmatpush1.msra.mxu0 0.0
        %588 = vmatprep.subr.mxu0 0.0
        %589 = vmatpush1.msra.mxu0 0.0
        %590 = vmatprep.subr.mxu0 0.0
        %591 = vmatpush1.msra.mxu0 0.0
        %592 = vmatprep.subr.mxu0 0.0
        %593 = vmatpush1.msra.mxu0 0.0
        %594 = vmatprep.subr.mxu0 0.0
        %595 = vmatpush1.msra.mxu0 0.0
        %596 = vmatprep.subr.mxu0 0.0
        %597 = vmatpush1.msra.mxu0 0.0
        %598 = vmatprep.subr.mxu0 0.0
        %599 = vmatpush1.msra.mxu0 0.0
        %600 = vmatprep.subr.mxu0 0.0
        %601 = vmatpush1.msra.mxu0 0.0
        %602 = vmatprep.subr.mxu0 0.0
        %603 = vmatpush1.msra.mxu0 0.0
        %604 = vmatprep.mubr.f32.mxu0 0.0
        %605 = vmatmul.mubr.f32.gmra.mrb[0].mxu0 %v532
        %v606 = vpop.f32.mrb[0].mxu0
        %v607 = vadd.f32 0.0, %v606
        %v608 = vpop.f32.mrb[0].mxu0
        %v609 = vadd.f32 0.0, %v608
        %610 = vdwg.mxu0
        %v611 = vadd.f32 %v495, %v607
        %v612 = vadd.f32 %v496, %v609
        %s613 = scalar_lea.vmem %s1, 32
        %v614 = vld [vmem:[%s613] sm:$0xff]
        %v616 = vsel %vm253, %v614, 0
        %v618 = vsel %vm257, %v509, 0
        %v620 = vsel %vm257, %v510, 0
        %622 = vmatprep.subr.mxu0 %v620
        %623 = vmatpush1.msra.mxu0 %v618
        %624 = vmatprep.subr.mxu0 0.0
        %625 = vmatpush1.msra.mxu0 0.0
        %626 = vmatprep.subr.mxu0 0.0
        %627 = vmatpush1.msra.mxu0 0.0
        %628 = vmatprep.subr.mxu0 0.0
        %629 = vmatpush1.msra.mxu0 0.0
        %630 = vmatprep.subr.mxu0 0.0
        %631 = vmatpush1.msra.mxu0 0.0
        %632 = vmatprep.subr.mxu0 0.0
        %633 = vmatpush1.msra.mxu0 0.0
        %634 = vmatprep.subr.mxu0 0.0
        %635 = vmatpush1.msra.mxu0 0.0
        %636 = vmatprep.subr.mxu0 0.0
        %637 = vmatpush1.msra.mxu0 0.0
        %638 = vmatprep.subr.mxu0 0.0
        %639 = vmatpush1.msra.mxu0 0.0
        %640 = vmatprep.subr.mxu0 0.0
        %641 = vmatpush1.msra.mxu0 0.0
        %642 = vmatprep.subr.mxu0 0.0
        %643 = vmatpush1.msra.mxu0 0.0
        %644 = vmatprep.subr.mxu0 0.0
        %645 = vmatpush1.msra.mxu0 0.0
        %646 = vmatprep.subr.mxu0 0.0
        %647 = vmatpush1.msra.mxu0 0.0
        %648 = vmatprep.subr.mxu0 0.0
        %649 = vmatpush1.msra.mxu0 0.0
        %650 = vmatprep.subr.mxu0 0.0
        %651 = vmatpush1.msra.mxu0 0.0
        %652 = vmatprep.subr.mxu0 0.0
        %653 = vmatpush1.msra.mxu0 0.0
        %654 = vmatprep.subr.mxu0 0.0
        %655 = vmatpush1.msra.mxu0 0.0
        %656 = vmatprep.subr.mxu0 0.0
        %657 = vmatpush1.msra.mxu0 0.0
        %658 = vmatprep.subr.mxu0 0.0
        %659 = vmatpush1.msra.mxu0 0.0
        %660 = vmatprep.subr.mxu0 0.0
        %661 = vmatpush1.msra.mxu0 0.0
        %662 = vmatprep.subr.mxu0 0.0
        %663 = vmatpush1.msra.mxu0 0.0
        %664 = vmatprep.subr.mxu0 0.0
        %665 = vmatpush1.msra.mxu0 0.0
        %666 = vmatprep.subr.mxu0 0.0
        %667 = vmatpush1.msra.mxu0 0.0
        %668 = vmatprep.subr.mxu0 0.0
        %669 = vmatpush1.msra.mxu0 0.0
        %670 = vmatprep.subr.mxu0 0.0
        %671 = vmatpush1.msra.mxu0 0.0
        %672 = vmatprep.subr.mxu0 0.0
        %673 = vmatpush1.msra.mxu0 0.0
        %674 = vmatprep.subr.mxu0 0.0
        %675 = vmatpush1.msra.mxu0 0.0
        %676 = vmatprep.subr.mxu0 0.0
        %677 = vmatpush1.msra.mxu0 0.0
        %678 = vmatprep.subr.mxu0 0.0
        %679 = vmatpush1.msra.mxu0 0.0
        %680 = vmatprep.subr.mxu0 0.0
        %681 = vmatpush1.msra.mxu0 0.0
        %682 = vmatprep.subr.mxu0 0.0
        %683 = vmatpush1.msra.mxu0 0.0
        %684 = vmatprep.subr.mxu0 0.0
        %685 = vmatpush1.msra.mxu0 0.0
        %686 = vmatprep.mubr.f32.mxu0 0.0
        %687 = vmatmul.mubr.f32.gmra.mrb[0].mxu0 %v616
        %v688 = vpop.f32.mrb[0].mxu0
        %v689 = vadd.f32 0.0, %v688
        %v690 = vpop.f32.mrb[0].mxu0
        %v691 = vadd.f32 0.0, %v690
        %692 = vdwg.mxu0
        %v693 = vadd.f32 %v611, %v689
        %v694 = vadd.f32 %v612, %v691
        %s695 = scalar_lea.vmem %s1, 40
        %v696 = vld [vmem:[%s695] sm:$0xff]
        %v698 = vsel %vm253, %v696, 0
        %v701 = vsel %vm257, %v527, 0
        %v704 = vsel %vm257, %v528, 0
        %706 = vmatprep.subr.mxu0 %v704
        %707 = vmatpush1.msra.mxu0 %v701
        %708 = vmatprep.subr.mxu0 0.0
        %709 = vmatpush1.msra.mxu0 0.0
        %710 = vmatprep.subr.mxu0 0.0
        %711 = vmatpush1.msra.mxu0 0.0
        %712 = vmatprep.subr.mxu0 0.0
        %713 = vmatpush1.msra.mxu0 0.0
        %714 = vmatprep.subr.mxu0 0.0
        %715 = vmatpush1.msra.mxu0 0.0
        %716 = vmatprep.subr.mxu0 0.0
        %717 = vmatpush1.msra.mxu0 0.0
        %718 = vmatprep.subr.mxu0 0.0
        %719 = vmatpush1.msra.mxu0 0.0
        %720 = vmatprep.subr.mxu0 0.0
        %721 = vmatpush1.msra.mxu0 0.0
        %722 = vmatprep.subr.mxu0 0.0
        %723 = vmatpush1.msra.mxu0 0.0
        %724 = vmatprep.subr.mxu0 0.0
        %725 = vmatpush1.msra.mxu0 0.0
        %726 = vmatprep.subr.mxu0 0.0
        %727 = vmatpush1.msra.mxu0 0.0
        %728 = vmatprep.subr.mxu0 0.0
        %729 = vmatpush1.msra.mxu0 0.0
        %730 = vmatprep.subr.mxu0 0.0
        %731 = vmatpush1.msra.mxu0 0.0
        %732 = vmatprep.subr.mxu0 0.0
        %733 = vmatpush1.msra.mxu0 0.0
        %734 = vmatprep.subr.mxu0 0.0
        %735 = vmatpush1.msra.mxu0 0.0
        %736 = vmatprep.subr.mxu0 0.0
        %737 = vmatpush1.msra.mxu0 0.0
        %738 = vmatprep.subr.mxu0 0.0
        %739 = vmatpush1.msra.mxu0 0.0
        %740 = vmatprep.subr.mxu0 0.0
        %741 = vmatpush1.msra.mxu0 0.0
        %742 = vmatprep.subr.mxu0 0.0
        %743 = vmatpush1.msra.mxu0 0.0
        %744 = vmatprep.subr.mxu0 0.0
        %745 = vmatpush1.msra.mxu0 0.0
        %746 = vmatprep.subr.mxu0 0.0
        %747 = vmatpush1.msra.mxu0 0.0
        %748 = vmatprep.subr.mxu0 0.0
        %749 = vmatpush1.msra.mxu0 0.0
        %750 = vmatprep.subr.mxu0 0.0
        %751 = vmatpush1.msra.mxu0 0.0
        %752 = vmatprep.subr.mxu0 0.0
        %753 = vmatpush1.msra.mxu0 0.0
        %754 = vmatprep.subr.mxu0 0.0
        %755 = vmatpush1.msra.mxu0 0.0
        %756 = vmatprep.subr.mxu0 0.0
        %757 = vmatpush1.msra.mxu0 0.0
        %758 = vmatprep.subr.mxu0 0.0
        %759 = vmatpush1.msra.mxu0 0.0
        %760 = vmatprep.subr.mxu0 0.0
        %761 = vmatpush1.msra.mxu0 0.0
        %762 = vmatprep.subr.mxu0 0.0
        %763 = vmatpush1.msra.mxu0 0.0
        %764 = vmatprep.subr.mxu0 0.0
        %765 = vmatpush1.msra.mxu0 0.0
        %766 = vmatprep.subr.mxu0 0.0
        %767 = vmatpush1.msra.mxu0 0.0
        %768 = vmatprep.subr.mxu0 0.0
        %769 = vmatpush1.msra.mxu0 0.0
        %770 = vmatprep.mubr.f32.mxu0 0.0
        %771 = vmatmul.mubr.f32.gmra.mrb[0].mxu0 %v698
        %v772 = vpop.f32.mrb[0].mxu0
        %v773 = vadd.f32 0.0, %v772
        %v774 = vpop.f32.mrb[0].mxu0
        %v775 = vadd.f32 0.0, %v774
        %776 = vdwg.mxu0
        %v777 = vadd.f32 %v693, %v773
        %v778 = vadd.f32 %v694, %v775
        %v779 = vld [vmem:[#allocation2] sm:$0xff]
        %v780 = vld [vmem:[#allocation2 + $0x8] sm:$0xf]
        %v783 = vcombine.high %v779, %v779
        %784 = vrot.lane.b32.xlu0 %v779, 96
        %v785 = vpop.permute.xlu0 %784
        %786 = vrot.lane.b32.xlu0 %v783, 96
        %v787 = vpop.permute.xlu0 %786
        %788 = vrot.lane.b32.xlu0 %v780, 96
        %v789 = vpop.permute.xlu0 %788
        %vm790 = vcmask 785408
        %v791 = vsel %vm790, %v785, %v787
        %v792 = vsel %vm790, %v787, %v789
        %795 = vrot.lane.b32.xlu0 %v791, 1
        %v796 = vpop.permute.xlu0 %795
        %797 = vrot.lane.b32.xlu0 %v792, 1
        %v798 = vpop.permute.xlu0 %797
        %v799 = vsel %vm236, %v796, %v798
        %v800 = vsel %vm236, %v798, %v796
        %801 = vrot.lane.b32.xlu0 %v791, 127
        %v802 = vpop.permute.xlu0 %801
        %803 = vrot.lane.b32.xlu0 %v792, 127
        %v804 = vpop.permute.xlu0 %803
        %v805 = vsel %vm243, %v802, %v804
        %v806 = vsel %vm243, %v804, %v802
        %v807 = vsel %vm224, %v805, %v800
        %v808 = vsel %vm225, %v806, %v799
        %v809 = vsel %vm226, %v800, %v805
        %v810 = vsel %vm227, %v799, %v806
        %s811 = scalar_lea.vmem %s1, 48
        %v812 = vld [vmem:[%s811] sm:$0xff]
        %v814 = vsel %vm253, %v812, 0
        %v817 = vsel %vm257, %v807, 0
        %v820 = vsel %vm257, %v808, 0
        %822 = vmatprep.subr.mxu0 %v820
        %823 = vmatpush1.msra.mxu0 %v817
        %824 = vmatprep.subr.mxu0 0.0
        %825 = vmatpush1.msra.mxu0 0.0
        %826 = vmatprep.subr.mxu0 0.0
        %827 = vmatpush1.msra.mxu0 0.0
        %828 = vmatprep.subr.mxu0 0.0
        %829 = vmatpush1.msra.mxu0 0.0
        %830 = vmatprep.subr.mxu0 0.0
        %831 = vmatpush1.msra.mxu0 0.0
        %832 = vmatprep.subr.mxu0 0.0
        %833 = vmatpush1.msra.mxu0 0.0
        %834 = vmatprep.subr.mxu0 0.0
        %835 = vmatpush1.msra.mxu0 0.0
        %836 = vmatprep.subr.mxu0 0.0
        %837 = vmatpush1.msra.mxu0 0.0
        %838 = vmatprep.subr.mxu0 0.0
        %839 = vmatpush1.msra.mxu0 0.0
        %840 = vmatprep.subr.mxu0 0.0
        %841 = vmatpush1.msra.mxu0 0.0
        %842 = vmatprep.subr.mxu0 0.0
        %843 = vmatpush1.msra.mxu0 0.0
        %844 = vmatprep.subr.mxu0 0.0
        %845 = vmatpush1.msra.mxu0 0.0
        %846 = vmatprep.subr.mxu0 0.0
        %847 = vmatpush1.msra.mxu0 0.0
        %848 = vmatprep.subr.mxu0 0.0
        %849 = vmatpush1.msra.mxu0 0.0
        %850 = vmatprep.subr.mxu0 0.0
        %851 = vmatpush1.msra.mxu0 0.0
        %852 = vmatprep.subr.mxu0 0.0
        %853 = vmatpush1.msra.mxu0 0.0
        %854 = vmatprep.subr.mxu0 0.0
        %855 = vmatpush1.msra.mxu0 0.0
        %856 = vmatprep.subr.mxu0 0.0
        %857 = vmatpush1.msra.mxu0 0.0
        %858 = vmatprep.subr.mxu0 0.0
        %859 = vmatpush1.msra.mxu0 0.0
        %860 = vmatprep.subr.mxu0 0.0
        %861 = vmatpush1.msra.mxu0 0.0
        %862 = vmatprep.subr.mxu0 0.0
        %863 = vmatpush1.msra.mxu0 0.0
        %864 = vmatprep.subr.mxu0 0.0
        %865 = vmatpush1.msra.mxu0 0.0
        %866 = vmatprep.subr.mxu0 0.0
        %867 = vmatpush1.msra.mxu0 0.0
        %868 = vmatprep.subr.mxu0 0.0
        %869 = vmatpush1.msra.mxu0 0.0
        %870 = vmatprep.subr.mxu0 0.0
        %871 = vmatpush1.msra.mxu0 0.0
        %872 = vmatprep.subr.mxu0 0.0
        %873 = vmatpush1.msra.mxu0 0.0
        %874 = vmatprep.subr.mxu0 0.0
        %875 = vmatpush1.msra.mxu0 0.0
        %876 = vmatprep.subr.mxu0 0.0
        %877 = vmatpush1.msra.mxu0 0.0
        %878 = vmatprep.subr.mxu0 0.0
        %879 = vmatpush1.msra.mxu0 0.0
        %880 = vmatprep.subr.mxu0 0.0
        %881 = vmatpush1.msra.mxu0 0.0
        %882 = vmatprep.subr.mxu0 0.0
        %883 = vmatpush1.msra.mxu0 0.0
        %884 = vmatprep.subr.mxu0 0.0
        %885 = vmatpush1.msra.mxu0 0.0
        %886 = vmatprep.mubr.f32.mxu0 0.0
        %887 = vmatmul.mubr.f32.gmra.mrb[0].mxu0 %v814
        %v888 = vpop.f32.mrb[0].mxu0
        %v889 = vadd.f32 0.0, %v888
        %v890 = vpop.f32.mrb[0].mxu0
        %v891 = vadd.f32 0.0, %v890
        %892 = vdwg.mxu0
        %v893 = vadd.f32 %v777, %v889
        %v894 = vadd.f32 %v778, %v891
        %s895 = scalar_lea.vmem %s1, 56
        %v896 = vld [vmem:[%s895] sm:$0xff]
        %v898 = vsel %vm253, %v896, 0
        %v900 = vsel %vm257, %v791, 0
        %v902 = vsel %vm257, %v792, 0
        %904 = vmatprep.subr.mxu0 %v902
        %905 = vmatpush1.msra.mxu0 %v900
        %906 = vmatprep.subr.mxu0 0.0
        %907 = vmatpush1.msra.mxu0 0.0
        %908 = vmatprep.subr.mxu0 0.0
        %909 = vmatpush1.msra.mxu0 0.0
        %910 = vmatprep.subr.mxu0 0.0
        %911 = vmatpush1.msra.mxu0 0.0
        %912 = vmatprep.subr.mxu0 0.0
        %913 = vmatpush1.msra.mxu0 0.0
        %914 = vmatprep.subr.mxu0 0.0
        %915 = vmatpush1.msra.mxu0 0.0
        %916 = vmatprep.subr.mxu0 0.0
        %917 = vmatpush1.msra.mxu0 0.0
        %918 = vmatprep.subr.mxu0 0.0
        %919 = vmatpush1.msra.mxu0 0.0
        %920 = vmatprep.subr.mxu0 0.0
        %921 = vmatpush1.msra.mxu0 0.0
        %922 = vmatprep.subr.mxu0 0.0
        %923 = vmatpush1.msra.mxu0 0.0
        %924 = vmatprep.subr.mxu0 0.0
        %925 = vmatpush1.msra.mxu0 0.0
        %926 = vmatprep.subr.mxu0 0.0
        %927 = vmatpush1.msra.mxu0 0.0
        %928 = vmatprep.subr.mxu0 0.0
        %929 = vmatpush1.msra.mxu0 0.0
        %930 = vmatprep.subr.mxu0 0.0
        %931 = vmatpush1.msra.mxu0 0.0
        %932 = vmatprep.subr.mxu0 0.0
        %933 = vmatpush1.msra.mxu0 0.0
        %934 = vmatprep.subr.mxu0 0.0
        %935 = vmatpush1.msra.mxu0 0.0
        %936 = vmatprep.subr.mxu0 0.0
        %937 = vmatpush1.msra.mxu0 0.0
        %938 = vmatprep.subr.mxu0 0.0
        %939 = vmatpush1.msra.mxu0 0.0
        %940 = vmatprep.subr.mxu0 0.0
        %941 = vmatpush1.msra.mxu0 0.0
        %942 = vmatprep.subr.mxu0 0.0
        %943 = vmatpush1.msra.mxu0 0.0
        %944 = vmatprep.subr.mxu0 0.0
        %945 = vmatpush1.msra.mxu0 0.0
        %946 = vmatprep.subr.mxu0 0.0
        %947 = vmatpush1.msra.mxu0 0.0
        %948 = vmatprep.subr.mxu0 0.0
        %949 = vmatpush1.msra.mxu0 0.0
        %950 = vmatprep.subr.mxu0 0.0
        %951 = vmatpush1.msra.mxu0 0.0
        %952 = vmatprep.subr.mxu0 0.0
        %953 = vmatpush1.msra.mxu0 0.0
        %954 = vmatprep.subr.mxu0 0.0
        %955 = vmatpush1.msra.mxu0 0.0
        %956 = vmatprep.subr.mxu0 0.0
        %957 = vmatpush1.msra.mxu0 0.0
        %958 = vmatprep.subr.mxu0 0.0
        %959 = vmatpush1.msra.mxu0 0.0
        %960 = vmatprep.subr.mxu0 0.0
        %961 = vmatpush1.msra.mxu0 0.0
        %962 = vmatprep.subr.mxu0 0.0
        %963 = vmatpush1.msra.mxu0 0.0
        %964 = vmatprep.subr.mxu0 0.0
        %965 = vmatpush1.msra.mxu0 0.0
        %966 = vmatprep.subr.mxu0 0.0
        %967 = vmatpush1.msra.mxu0 0.0
        %968 = vmatprep.mubr.f32.mxu0 0.0
        %969 = vmatmul.mubr.f32.gmra.mrb[0].mxu0 %v898
        %v970 = vpop.f32.mrb[0].mxu0
        %v971 = vadd.f32 0.0, %v970
        %v972 = vpop.f32.mrb[0].mxu0
        %v973 = vadd.f32 0.0, %v972
        %974 = vdwg.mxu0
        %v975 = vadd.f32 %v893, %v971
        %v976 = vadd.f32 %v894, %v973
        %s977 = scalar_lea.vmem %s1, 64
        %v978 = vld [vmem:[%s977] sm:$0xff]
        %v980 = vsel %vm253, %v978, 0
        %v983 = vsel %vm257, %v809, 0
        %v986 = vsel %vm257, %v810, 0
        %988 = vmatprep.subr.mxu0 %v986
        %989 = vmatpush1.msra.mxu0 %v983
        %990 = vmatprep.subr.mxu0 0.0
        %991 = vmatpush1.msra.mxu0 0.0
        %992 = vmatprep.subr.mxu0 0.0
        %993 = vmatpush1.msra.mxu0 0.0
        %994 = vmatprep.subr.mxu0 0.0
        %995 = vmatpush1.msra.mxu0 0.0
        %996 = vmatprep.subr.mxu0 0.0
        %997 = vmatpush1.msra.mxu0 0.0
        %998 = vmatprep.subr.mxu0 0.0
        %999 = vmatpush1.msra.mxu0 0.0
        %1000 = vmatprep.subr.mxu0 0.0
        %1001 = vmatpush1.msra.mxu0 0.0
        %1002 = vmatprep.subr.mxu0 0.0
        %1003 = vmatpush1.msra.mxu0 0.0
        %1004 = vmatprep.subr.mxu0 0.0
        %1005 = vmatpush1.msra.mxu0 0.0
        %1006 = vmatprep.subr.mxu0 0.0
        %1007 = vmatpush1.msra.mxu0 0.0
        %1008 = vmatprep.subr.mxu0 0.0
        %1009 = vmatpush1.msra.mxu0 0.0
        %1010 = vmatprep.subr.mxu0 0.0
        %1011 = vmatpush1.msra.mxu0 0.0
        %1012 = vmatprep.subr.mxu0 0.0
        %1013 = vmatpush1.msra.mxu0 0.0
        %1014 = vmatprep.subr.mxu0 0.0
        %1015 = vmatpush1.msra.mxu0 0.0
        %1016 = vmatprep.subr.mxu0 0.0
        %1017 = vmatpush1.msra.mxu0 0.0
        %1018 = vmatprep.subr.mxu0 0.0
        %1019 = vmatpush1.msra.mxu0 0.0
        %1020 = vmatprep.subr.mxu0 0.0
        %1021 = vmatpush1.msra.mxu0 0.0
        %1022 = vmatprep.subr.mxu0 0.0
        %1023 = vmatpush1.msra.mxu0 0.0
        %1024 = vmatprep.subr.mxu0 0.0
        %1025 = vmatpush1.msra.mxu0 0.0
        %1026 = vmatprep.subr.mxu0 0.0
        %1027 = vmatpush1.msra.mxu0 0.0
        %1028 = vmatprep.subr.mxu0 0.0
        %1029 = vmatpush1.msra.mxu0 0.0
        %1030 = vmatprep.subr.mxu0 0.0
        %1031 = vmatpush1.msra.mxu0 0.0
        %1032 = vmatprep.subr.mxu0 0.0
        %1033 = vmatpush1.msra.mxu0 0.0
        %1034 = vmatprep.subr.mxu0 0.0
        %1035 = vmatpush1.msra.mxu0 0.0
        %1036 = vmatprep.subr.mxu0 0.0
        %1037 = vmatpush1.msra.mxu0 0.0
        %1038 = vmatprep.subr.mxu0 0.0
        %1039 = vmatpush1.msra.mxu0 0.0
        %1040 = vmatprep.subr.mxu0 0.0
        %1041 = vmatpush1.msra.mxu0 0.0
        %1042 = vmatprep.subr.mxu0 0.0
        %1043 = vmatpush1.msra.mxu0 0.0
        %1044 = vmatprep.subr.mxu0 0.0
        %1045 = vmatpush1.msra.mxu0 0.0
        %1046 = vmatprep.subr.mxu0 0.0
        %1047 = vmatpush1.msra.mxu0 0.0
        %1048 = vmatprep.subr.mxu0 0.0
        %1049 = vmatpush1.msra.mxu0 0.0
        %1050 = vmatprep.subr.mxu0 0.0
        %1051 = vmatpush1.msra.mxu0 0.0
        %1052 = vmatprep.mubr.f32.mxu0 0.0
        %1053 = vmatmul.mubr.f32.gmra.mrb[0].mxu0 %v980
        %v1054 = vpop.f32.mrb[0].mxu0
        %v1055 = vadd.f32 0.0, %v1054
        %v1056 = vpop.f32.mrb[0].mxu0
        %v1057 = vadd.f32 0.0, %v1056
        %1058 = vdwg.mxu0
        %v1059 = vadd.f32 %v975, %v1055
        %v1060 = vadd.f32 %v976, %v1057
        %v1061 = vld [vmem:[%s2] sm:$0xff]
        %1063 = vset.pattern.permute.xlu0 0
        %1064 = vperm.xlu0 %1063, %v1061
        %v1065 = vpop.permute.xlu0 %1064
        %v1067 = vadd.f32 %v1059, %v1065
        %v1068 = vadd.f32 %v1060, %v1065
        %vm1069 = vcmp.gt.f32.partialorder %v1067, 0.0
        %vm1070 = vcmp.gt.f32.partialorder %v1068, 0.0
        %v1071 = vmul.f32 %v1067, 1.442695
        %v1072 = vpow.pop %v1071
        %v1073 = vmul.f32 %v1068, 1.442695
        %v1074 = vpow.pop %v1073
        %v1075 = vsub.f32 %v1072, 1.0
        %v1076 = vsub.f32 %v1074, 1.0
        %v1077 = vsel %vm1069, %v1067, %v1075
        %v1078 = vsel %vm1070, %v1068, %v1076
        %1079 = vst [vmem:[%s163] sm:$0xff] %v1077
        %1080 = vst [vmem:[%s163 + $0x8] sm:$0xff] %v1078
        %s1081 = sand.u32 %s93, 1
        %s1082 = scalar_lea.sflag [#allocation4], %s1081
        %s1083 = sand.u32 %s93, 1
        %s1084 = smul.addr %s1083, 16
        %s1085 = scalar_lea.vmem [#allocation3], %s1084
        // Predicated region
        $region33: #{tpu_custom_call.1} parent=31 // pred_check
          %p1086 = pneg %p103
        $region34: #{tpu_custom_call.1} parent=31 // pred_check_branch
          %1088 = sbr.rel (%p1086) target = $region36
        $region35: #{tpu_custom_call.1} parent=31 // pred_region
          %s1090 = ssub.s32 256, 256
          %1091 = vsyncadd %s1082, %s1090
          %s1092 = smul.addr %s17, 2
          %s1093 = smul.addr %s1092, 128
          %s1094 = scalar_lea.hbm %s3, %s1093
          %s1096 = sshll.u32 %s1085, 4
          %s1097 = int_to_ptr.vmem [resolvable:$true] %s1096
          %1099 = dma.vmem_to_hbm [thread:$0]  %s1097, 256, %s1094, %s1082
        $region36: #{tpu_custom_call.1} parent=31 // pred_fallthru
          _
      $region32: #{tpu_custom_call.1} parent=5 // pred_fallthru
        _
      %p1100 = scmp.le.s32.totalorder 2, %s12
      // Predicated region
      $region37: #{tpu_custom_call.1} parent=5 // pred_check
        %p1101 = pneg %p1100
      $region38: #{tpu_custom_call.1} parent=5 // pred_check_branch
        %1103 = sbr.rel (%p1101) target = $region40
      $region39: #{tpu_custom_call.1} parent=5 // pred_region
        %s1104 = ssub.s32 %s12, 2
        // Predicated region
        $region41: #{tpu_custom_call.1} parent=39 // pred_check
          %p1105 = pneg %p109
        $region42: #{tpu_custom_call.1} parent=39 // pred_check_branch
          %1107 = sbr.rel (%p1105) target = $region44
        $region43: #{tpu_custom_call.1} parent=39 // pred_region
          %s1108 = sand.u32 %s94, 1
          %s1109 = scalar_lea.sflag [#allocation4], %s1108
          %s1110 = sand.u32 %s94, 1
          %s1111 = smul.addr %s1110, 16
          %s1112 = scalar_lea.vmem [#allocation3], %s1111
          %1113 = dma.done %s1109, 256
        $region44: #{tpu_custom_call.1} parent=39 // pred_fallthru
          _
      $region40: #{tpu_custom_call.1} parent=5 // pred_fallthru
        _
    $region6: #{tpu_custom_call.1} parent=1 // loop_footer
      %s16 = sadd.s32 1, %s12
    $region7: #{tpu_custom_call.1} parent=1 // loop_footer_branch
      %11 = sbr.rel target = $region3
    $region8: #{tpu_custom_call.1} parent=1 // loop_exit
      _
    %1114 = vsyncpa [#allocation4], 1
    %s1115 = scalar_lea.sflag [#allocation4], 1
    %1116 = vsyncpa %s1115, 1

</llo_original>
